<compile_context>
chip_gen: v5e
topology: v5e:2x2
jax: 0.10.0
libtpu: 0.0.40
codegen_flags: <defaults>
</compile_context>

<pallas_src>
import numpy as np
import jax
import jax.numpy as jnp
from jax import lax
from jax.experimental import pallas as pl
from jax.experimental.pallas import tpu as pltpu


# ------------------------------ Pallas kernels ------------------------------ #
def _gram_kernel(x_ref, y_ref, g_ref):
    """G = X @ Y^T  (fused user + bipartite gram, [B, B]); single grid step."""
    g_ref[...] = lax.dot_general(
        x_ref[...], y_ref[...],
        dimension_numbers=(((1,), (1,)), ((), ())),
        preferred_element_type=jnp.float32)


def _profile_proj_kernel(p_ref, vi_ref, t_ref):
    """Pass 1: t_partial[s] += P[:, tile] @ Vi[tile, :].

    grid = (reduce_splits, tiles_per_split); axis 0 'parallel' (one partial
    accumulator per split -> one per TensorCore on v7x), axis 1 'arbitrary'
    (K-reduction over item tiles, accumulator resident in VMEM).
    """
    @pl.when(pl.program_id(1) == 0)
    def _():
        t_ref[...] = jnp.zeros_like(t_ref)

    acc = jnp.dot(p_ref[...], vi_ref[...], preferred_element_type=jnp.float32)
    t_ref[...] += acc[None, :, :]


def _scores_kernel(g_ref, t_ref, p_ref, vi_ref, o_ref):
    """Pass 2: out[:, tile] = G_scaled @ P[:, tile] + t_scaled @ Vi[tile, :]^T.

    G_scaled / t_scaled already carry the sigmoid filters and the final 1/3,
    and are already in the compute dtype -> no per-tile VPU work here.
    """
    ub = jnp.dot(g_ref[...], p_ref[...], preferred_element_type=jnp.float32)
    item = lax.dot_general(
        t_ref[...], vi_ref[...],
        dimension_numbers=(((1,), (1,)), ((), ())),
        preferred_element_type=jnp.float32)
    # TODO(synk): emit bf16 scores (halves the [B, n_items] writeback) once the
    # downstream consumer tolerates it.
    o_ref[...] = (ub + item).astype(o_ref.dtype)


# --------------------------------- helpers ----------------------------------- #
def _vmem_limit_bytes(per_step_bytes):
    """Scoped-VMEM limit: double-buffered working set + headroom, clamped so it
    is safe on every generation (v5e default 16 MiB, v7x physical 64 MiB)."""
    return int(min(max(4 * per_step_bytes + (4 << 20), 32 << 20), 56 << 20))


def prepare_state(adj, user_eigenvecs, item_eigenvecs, bipartite_eigenvecs,
                  u_w, i_w, b_w, *, compute_dtype=jnp.bfloat16,
                  tile_items=512, reduce_splits=1):
    """One-time (model-init) buffer preparation: cast to the compute dtype and
    pad the item axis to a multiple of tile_items * reduce_splits, so the
    per-forward hot path never pays an HBM pass for pad/cast."""
    adj = np.asarray(adj, np.float32)
    Vi = np.asarray(item_eigenvecs, np.float32)
    n_users, n_items = adj.shape
    Ei = Vi.shape[1]

    chunk = tile_items * reduce_splits
    n_items_p = ((n_items + chunk - 1) // chunk) * chunk
    pad = n_items_p - n_items
    if pad:
        adj = np.pad(adj, ((0, 0), (0, pad)))
        Vi = np.pad(Vi, ((0, pad), (0, 0)))

    return dict(
        # adj is binary -> exact in bf16; padded columns are zero.
        adj=jnp.asarray(adj, compute_dtype),                    # [U, Ip]
        Vi=jnp.asarray(Vi, compute_dtype),                      # [Ip, Ei]
        Uv=jnp.asarray(user_eigenvecs, jnp.float32),            # [U, Eu]
        Bv=jnp.asarray(bipartite_eigenvecs, jnp.float32),       # [U+I, Eb]
        u_w=jnp.asarray(u_w, jnp.float32),
        i_w=jnp.asarray(i_w, jnp.float32),
        b_w=jnp.asarray(b_w, jnp.float32),
        n_items=n_items, n_items_p=n_items_p, Ei=Ei,
        tile_items=tile_items, reduce_splits=reduce_splits,
        compute_dtype=compute_dtype,
    )


# --------------------------------- forward ----------------------------------- #
def full_spectrum_cf_forward(state, users):
    """Truncated-mode FullSpectrumCF forward for a batch of user ids."""
    users = jnp.asarray(users, jnp.int32)
    cd = state["compute_dtype"]
    itemsize = jnp.dtype(cd).itemsize

    n_items = state["n_items"]
    n_items_p = state["n_items_p"]
    Ei = state["Ei"]
    tile = state["tile_items"]
    splits = state["reduce_splits"]
    tiles_per_split = n_items_p // (tile * splits)
    n_tiles = n_items_p // tile
    B = int(users.shape[0])

    # Per-batch gathers. user_profiles comes from the binary adjacency exactly
    # like the PyTorch loop (adj is 0/1).
    # TODO(synk): gather the P rows in-kernel via PrefetchScalarGridSpec +
    # row-selecting index_map to skip this extra HBM round-trip of [B, Ip].
    P_c = jnp.take(state["adj"], users, axis=0)            # [B, Ip] compute dtype
    Uv = jnp.take(state["Uv"], users, axis=0)              # [B, Eu]
    Bv = jnp.take(state["Bv"], users, axis=0)              # [B, Eb]
    Vi = state["Vi"]                                       # [Ip, Ei]

    # FullSpectrumFilter('truncated').forward == sigmoid(filter_weights).
    uf = jax.nn.sigmoid(state["u_w"])
    itf = jax.nn.sigmoid(state["i_w"])
    bf = jax.nn.sigmoid(state["b_w"])

    # Fuse user + bipartite branches:  Uv diag(uf) Uv^T + Bv diag(bf) Bv^T == X @ Y^T
    X = jnp.concatenate([Uv * uf, Bv * bf], axis=1).astype(cd)   # [B, E]
    Y = jnp.concatenate([Uv, Bv], axis=1).astype(cd)             # [B, E]
    E = X.shape[1]

    # ---- gram micro-kernel (single step, whole-array blocks) -----------------
    G = pl.pallas_call(
        _gram_kernel,
        out_shape=jax.ShapeDtypeStruct((B, B), jnp.float32),
        grid=(1,),
        in_specs=[pl.BlockSpec((B, E), lambda i: (0, 0)),
                  pl.BlockSpec((B, E), lambda i: (0, 0))],
        out_specs=pl.BlockSpec((B, B), lambda i: (0, 0)),
    )(X, Y)

    # ---- pass 1: t_partial[s] = sum_k P[:, tile(s,k)] @ Vi[tile(s,k), :] -----
    step1 = (B * tile + tile * Ei) * itemsize + B * Ei * 4
    t_part = pl.pallas_call(
        _profile_proj_kernel,
        out_shape=jax.ShapeDtypeStruct((splits, B, Ei), jnp.float32),
        grid=(splits, tiles_per_split),
        in_specs=[
            pl.BlockSpec((B, tile), lambda s, k: (0, s * tiles_per_split + k)),
            pl.BlockSpec((tile, Ei), lambda s, k: (s * tiles_per_split + k, 0)),
        ],
        out_specs=pl.BlockSpec((1, B, Ei), lambda s, k: (s, 0, 0)),
        compiler_params=pltpu.CompilerParams(
            dimension_semantics=("parallel", "arbitrary"),
            vmem_limit_bytes=_vmem_limit_bytes(step1)),
    )(P_c, Vi)
    t0 = jnp.sum(t_part, axis=0)                          # [B, Ei] f32

    # Fold the item filter and the final /3 into the tiny resident operands
    # (no per-tile scaling/casting inside the streaming pass-2 kernel).
    G_c = (G * (1.0 / 3.0)).astype(cd)                     # [B, B]
    t_c = (t0 * (itf * (1.0 / 3.0))).astype(cd)            # [B, Ei]

    # ---- pass 2: out[:, tile] = G_c @ P_tile + t_c @ Vi_tile^T ---------------
    step2 = ((B * tile + tile * Ei) * itemsize + B * tile * 4
             + (B * B + B * Ei) * itemsize)
    out = pl.pallas_call(
        _scores_kernel,
        out_shape=jax.ShapeDtypeStruct((B, n_items_p), jnp.float32),
        grid=(n_tiles,),
        in_specs=[
            pl.BlockSpec((B, B), lambda j: (0, 0)),
            pl.BlockSpec((B, Ei), lambda j: (0, 0)),
            pl.BlockSpec((B, tile), lambda j: (0, j)),
            pl.BlockSpec((tile, Ei), lambda j: (j, 0)),
        ],
        out_specs=pl.BlockSpec((B, tile), lambda j: (0, j)),
        compiler_params=pltpu.CompilerParams(
            dimension_semantics=("parallel",),
            vmem_limit_bytes=_vmem_limit_bytes(step2)),
    )(G_c, t_c, P_c, Vi)

    return out[:, :n_items]


# ------------------------------ setup glue ---------------------------------- #
def init_filter_weights(n_eigen):
    # FullSpectrumFilter._initialize_weights: w[i] = 0.8 * exp(-2*i / n_eigen)
    i = np.arange(n_eigen, dtype=np.float32)
    return (0.8 * np.exp(-2.0 * i / n_eigen)).astype(np.float32)


def topk_eigvecs(sym_mat, k):
    """Mimic eigsh(..., k, which='LM'): top-k by |eigenvalue|, ascending order."""
    vals, vecs = np.linalg.eigh(sym_mat)
    order = np.argsort(np.abs(vals))[-k:]
    order = order[np.argsort(vals[order])]
    return vals[order].astype(np.float32), vecs[:, order].astype(np.float32)


def build_model_buffers(adj, u_eigen, i_eigen, b_eigen):
    adj = np.asarray(adj, dtype=np.float64)
    rowsum = adj.sum(axis=1)
    d_u = np.power(rowsum + 1e-10, -0.5)
    d_u[np.isinf(d_u)] = 0.0
    colsum = adj.sum(axis=0)
    d_i = np.power(colsum + 1e-10, -0.5)
    d_i[np.isinf(d_i)] = 0.0
    norm_adj = (adj * d_u[:, None]) * d_i[None, :]

    user_sim = norm_adj @ norm_adj.T
    _, u_vecs = topk_eigvecs(user_sim, u_eigen)

    item_sim = norm_adj.T @ norm_adj
    _, i_vecs = topk_eigvecs(item_sim, i_eigen)

    n_u, n_i = adj.shape
    bip = np.zeros((n_u + n_i, n_u + n_i), dtype=np.float64)
    bip[:n_u, n_u:] = norm_adj
    bip[n_u:, :n_u] = norm_adj.T
    _, b_vecs = topk_eigvecs(bip, b_eigen)

    return u_vecs, i_vecs, b_vecs


def reference_forward_np(P, Uv, Vi, Bv, uw, iw, bw):
    """Host float64 reference with the exact PyTorch evaluation order."""
    P = P.astype(np.float64); Uv = Uv.astype(np.float64)
    Vi = Vi.astype(np.float64); Bv = Bv.astype(np.float64)
    uf = 1.0 / (1.0 + np.exp(-uw.astype(np.float64)))
    itf = 1.0 / (1.0 + np.exp(-iw.astype(np.float64)))
    bf = 1.0 / (1.0 + np.exp(-bw.astype(np.float64)))
    user_scores = Uv @ np.diag(uf) @ Uv.T @ P
    item_scores = P @ Vi @ np.diag(itf) @ Vi.T
    bip_scores = Bv @ np.diag(bf) @ Bv.T @ P
    return ((user_scores + item_scores + bip_scores) / 3.0).astype(np.float32)


# ----------------------------------- main ----------------------------------- #
if __name__ == "__main__":
    n_users, n_items = 64, 512
    u_eigen, i_eigen, b_eigen = 16, 64, 32
    batch = 16            # multiple of 8 -> sublane-aligned M for the MXU

    key = jax.random.PRNGKey(0)
    k_adj, k_users = jax.random.split(key)

    # deterministic synthetic binary interaction matrix (adj_mat)
    adj = np.asarray(
        jax.random.bernoulli(k_adj, p=0.1, shape=(n_users, n_items))
    ).astype(np.float32)

    # eigendecomposition buffers (preprocessing from __init__)
    user_eigenvecs, item_eigenvecs, bipartite_eigenvecs = build_model_buffers(
        adj, u_eigen, i_eigen, b_eigen)

    # deterministic parameter init (FullSpectrumFilter, mode='truncated')
    u_w = init_filter_weights(u_eigen)
    i_w = init_filter_weights(i_eigen)
    b_w = init_filter_weights(b_eigen)

    users = np.asarray(
        jax.random.randint(k_users, (batch,), 0, n_users), dtype=np.int32)

    ref = reference_forward_np(adj[users], user_eigenvecs[users],
                               item_eigenvecs, bipartite_eigenvecs[users],
                               u_w, i_w, b_w)

    # f32 compute, large tile, single-core reduction (tight check; v5e/v6e path)
    st_f32 = prepare_state(adj, user_eigenvecs, item_eigenvecs,
                           bipartite_eigenvecs, u_w, i_w, b_w,
                           compute_dtype=jnp.float32,
                           tile_items=512, reduce_splits=1)
    out_f32 = jax.block_until_ready(full_spectrum_cf_forward(st_f32, users))
    np.testing.assert_allclose(np.asarray(out_f32), ref, rtol=1e-3, atol=1e-3)

    # f32 compute, split pass-1 reduction (exercises the v7x 2-TensorCore path)
    st_split = prepare_state(adj, user_eigenvecs, item_eigenvecs,
                             bipartite_eigenvecs, u_w, i_w, b_w,
                             compute_dtype=jnp.float32,
                             tile_items=128, reduce_splits=2)
    out_split = jax.block_until_ready(full_spectrum_cf_forward(st_split, users))
    np.testing.assert_allclose(np.asarray(out_split), ref, rtol=1e-3, atol=1e-3)

    # bf16 operands with f32 MXU accumulation (loose check)
    st_bf16 = prepare_state(adj, user_eigenvecs, item_eigenvecs,
                            bipartite_eigenvecs, u_w, i_w, b_w,
                            compute_dtype=jnp.bfloat16,
                            tile_items=512, reduce_splits=1)
    out_bf16 = jax.block_until_ready(full_spectrum_cf_forward(st_bf16, users))
    np.testing.assert_allclose(np.asarray(out_bf16), ref, rtol=5e-2, atol=5e-2)

    print("KERNEL_OK")
</pallas_src>

<mosaic_0001>
module attributes {stable_mosaic.version = 11 : i64} {
  func.func @_gram_kernel(%arg0: i32, %arg1: memref<16x48xf32, #tpu.memory_space<vmem>>, %arg2: memref<16x48xf32, #tpu.memory_space<vmem>>, %arg3: memref<16x16xf32, #tpu.memory_space<vmem>>) attributes {dimension_semantics = [#tpu.dimension_semantics<arbitrary>], iteration_bounds = array<i64: 1>, scalar_prefetch = 0 : i64, scratch_operands = 0 : i64, tpu.core_type = #tpu.core_type<tc>, window_params = [{pipeline_mode = #tpu.pipeline_mode<synchronous>, transform_indices = @transform_0, window_bounds = array<i64: 16, 48>}, {pipeline_mode = #tpu.pipeline_mode<synchronous>, transform_indices = @transform_1, window_bounds = array<i64: 16, 48>}, {pipeline_mode = #tpu.pipeline_mode<synchronous>, transform_indices = @transform_2, window_bounds = array<i64: 16, 16>}]} {
    %c0 = arith.constant 0 : index
    %c0_0 = arith.constant 0 : index
    %0 = vector.load %arg1[%c0, %c0_0] : memref<16x48xf32, #tpu.memory_space<vmem>>, vector<16x48xf32>
    %c0_1 = arith.constant 0 : index
    %c0_2 = arith.constant 0 : index
    %1 = vector.load %arg2[%c0_1, %c0_2] : memref<16x48xf32, #tpu.memory_space<vmem>>, vector<16x48xf32>
    %cst = arith.constant dense<0.000000e+00> : vector<16x16xf32>
    %2 = tpu.matmul %0, %1, %cst {dimension_numbers = #tpu.dot_dimension_numbers<[1], [1], [0], [0], [0, 0, 1, 0], [], []>} : vector<16x48xf32>, vector<16x48xf32>, vector<16x16xf32> -> vector<16x16xf32>
    %c0_3 = arith.constant 0 : index
    %c0_4 = arith.constant 0 : index
    %3 = vector.load %arg3[%c0_3, %c0_4] : memref<16x16xf32, #tpu.memory_space<vmem>>, vector<16x16xf32>
    tpu.vector_store %arg3[%c0_3, %c0_4], %2 {strides = array<i32>} : memref<16x16xf32, #tpu.memory_space<vmem>>, vector<16x16xf32>,
    return
  }
  func.func @transform_0(%arg0: i32) -> (i32, i32) {
    %c0_i32 = arith.constant 0 : i32
    %c0_i32_0 = arith.constant 0 : i32
    %c0_i32_1 = arith.constant 0 : i32
    return %c0_i32, %c0_i32_0 : i32, i32
  }
  func.func @transform_1(%arg0: i32) -> (i32, i32) {
    %c0_i32 = arith.constant 0 : i32
    %c0_i32_0 = arith.constant 0 : i32
    %c0_i32_1 = arith.constant 0 : i32
    return %c0_i32, %c0_i32_0 : i32, i32
  }
  func.func @transform_2(%arg0: i32) -> (i32, i32) {
    %c0_i32 = arith.constant 0 : i32
    %c0_i32_0 = arith.constant 0 : i32
    %c0_i32_1 = arith.constant 0 : i32
    return %c0_i32, %c0_i32_0 : i32, i32
  }
}

</mosaic_0001>

<llo_original>
// kernel: tpu_custom_call.1
$region0: #{tpu_custom_call.1}
  #allocation0 [shape = 'u32[]', space=smem, size = 0x4, offset = 0x4, fixed_abs, tag = 'smem constant byte address 0x4 - core index']
  #allocation1 [shape = 'u32[72,128]{1,0:T(1,128)}', space=vmem, size = 0x9000, scoped, tag = 'internal scratch']
  %s0 = inlined_call_operand.hbm [shape: f32[16,48], index: 0, kind: input, shape index: {}]
  %s1 = inlined_call_operand.hbm [shape: f32[16,48], index: 1, kind: input, shape index: {}]
  %s2 = inlined_call_operand.hbm [shape: f32[16,16], index: 2, kind: output, shape index: {}]
  %s3 = sld [smem:[#allocation0]]
  $region26: #{tpu_custom_call.1} parent=0
    _
  %s5 = ssub.s32 1, %s3
  %s6 = scalar_select 0, %s5, %s3
  $region1: #{tpu_custom_call.1} parent=0
    #allocation2 [shape = 'u8[8192]{0}', space=vmem, size = 0x2000, scoped, tag = 'input window, operand 0, single buffered']
    #allocation3 [shape = 's32[1]{0}', space=sflag, size = 0x4, scoped, tag = 'scoped memory for tpu_custom_call.1']
    #allocation4 [shape = 's32[1]{0}', space=sflag, size = 0x4, scoped, tag = 'scoped memory for tpu_custom_call.1']
    #allocation5 [shape = 'u8[8192]{0}', space=vmem, size = 0x2000, scoped, tag = 'input window, operand 1, single buffered']
    #allocation6 [shape = 's32[1]{0}', space=sflag, size = 0x4, scoped, tag = 'scoped memory for tpu_custom_call.1']
    #allocation7 [shape = 'u8[8192]{0}', space=vmem, size = 0x2000, scoped, tag = 'output window, operand 0, single buffered']
    %7 = vsyncpa [#allocation3], 0
    %8 = vsyncpa [#allocation6], 0
    %9 = vsyncpa [#allocation4], 0
    // Predicated region
    $region2: #{tpu_custom_call.1} parent=1 // pred_check
      _
    $region3: #{tpu_custom_call.1} parent=1 // pred_check_branch
      %11 = sbr.rel (0) target = $region5
    $region4: #{tpu_custom_call.1} parent=1 // pred_region
      %13 = vsyncadd [#allocation3], 0
      %s14 = sshll.u32 %s0, 4
      %s15 = int_to_ptr.hbm [resolvable:$true] %s14
      %s16 = sshll.u32 [#allocation2], 4
      %s17 = int_to_ptr.vmem [resolvable:$true] %s16
      %22 = dma.hbm_to_vmem [thread:$0]  %s15, 256, %s17, [#allocation3], 128, 128, 8
    $region5: #{tpu_custom_call.1} parent=1 // pred_fallthru
      _
    // Predicated region
    $region6: #{tpu_custom_call.1} parent=1 // pred_check
      _
    $region7: #{tpu_custom_call.1} parent=1 // pred_check_branch
      %24 = sbr.rel (0) target = $region9
    $region8: #{tpu_custom_call.1} parent=1 // pred_region
      %26 = vsyncadd [#allocation6], 0
      %s27 = sshll.u32 %s1, 4
      %s28 = int_to_ptr.hbm [resolvable:$true] %s27
      %s29 = sshll.u32 [#allocation5], 4
      %s30 = int_to_ptr.vmem [resolvable:$true] %s29
      %35 = dma.hbm_to_vmem [thread:$0]  %s28, 256, %s30, [#allocation6], 128, 128, 8
    $region9: #{tpu_custom_call.1} parent=1 // pred_fallthru
      _
    // Predicated region
    $region10: #{tpu_custom_call.1} parent=1 // pred_check
      _
    $region11: #{tpu_custom_call.1} parent=1 // pred_check_branch
      %37 = sbr.rel (0) target = $region13
    $region12: #{tpu_custom_call.1} parent=1 // pred_region
      %39 = dma.done [#allocation3], 256
    $region13: #{tpu_custom_call.1} parent=1 // pred_fallthru
      _
    // Predicated region
    $region14: #{tpu_custom_call.1} parent=1 // pred_check
      _
    $region15: #{tpu_custom_call.1} parent=1 // pred_check_branch
      %41 = sbr.rel (0) target = $region17
    $region16: #{tpu_custom_call.1} parent=1 // pred_region
      %43 = dma.done [#allocation6], 256
    $region17: #{tpu_custom_call.1} parent=1 // pred_fallthru
      _
    %v44 = vld [vmem:[#allocation2] sm:$0xff]
    %v45 = vld [vmem:[#allocation2 + $0x8] sm:$0xff]
    %v46 = vld [vmem:[#allocation5] sm:$0xff]
    %v47 = vld [vmem:[#allocation5 + $0x8] sm:$0xff]
    %vm48 = vcmask 392192
    %v50 = vsel %vm48, %v44, 0
    %v53 = vsel %vm48, %v45, 0
    %v56 = vsel %vm48, %v46, 0
    %v59 = vsel %vm48, %v47, 0
    %61 = vmatpush.xpose.msra.mxu0 0.0
    %62 = vmatpush.xpose.msra.mxu0 0.0
    %63 = vmatpush.xpose.msra.mxu0 0.0
    %64 = vmatpush.xpose.msra.mxu0 0.0
    %65 = vmatpush.xpose.msra.mxu0 0.0
    %66 = vmatpush.xpose.msra.mxu0 0.0
    %67 = vmatpush.xpose.msra.mxu0 0.0
    %68 = vmatpush.xpose.msra.mxu0 0.0
    %69 = vmatpush.xpose.msra.mxu0 0.0
    %70 = vmatpush.xpose.msra.mxu0 0.0
    %71 = vmatpush.xpose.msra.mxu0 0.0
    %72 = vmatpush.xpose.msra.mxu0 0.0
    %73 = vmatpush.xpose.msra.mxu0 0.0
    %74 = vmatpush.xpose.msra.mxu0 0.0
    %75 = vmatpush.xpose.msra.mxu0 %v59
    %76 = vmatpush.xpose.msra.mxu0 %v56
    %77 = vmatmul.f32.gmra.mxu0 %v50
    %v78 = vpop.f32.mrf.mxu0
    %v79 = vadd.f32 0.0, %v78
    %80 = vmatmul.f32.gmra.mxu0 %v53
    %v81 = vpop.f32.mrf.mxu0
    %v82 = vadd.f32 0.0, %v81
    %83 = vdwg.mxu0
    %vm84 = vcmask 130048
    %85 = vst.msk [vmem:[#allocation7] sm:$0xff] %vm84, %v79
    %86 = vst.msk [vmem:[#allocation7 + $0x8] sm:$0xff] %vm84, %v82
    // Predicated region
    $region18: #{tpu_custom_call.1} parent=1 // pred_check
      _
    $region19: #{tpu_custom_call.1} parent=1 // pred_check_branch
      %88 = sbr.rel (0) target = $region21
    $region20: #{tpu_custom_call.1} parent=1 // pred_region
      %90 = vsyncadd [#allocation4], 0
      %s91 = sshll.u32 [#allocation7], 4
      %s92 = int_to_ptr.vmem [resolvable:$true] %s91
      %s93 = sshll.u32 %s2, 4
      %s94 = int_to_ptr.hbm [resolvable:$true] %s93
      %99 = dma.vmem_to_hbm [thread:$0]  %s92, 256, %s94, [#allocation4], 128, 128, 8
    $region21: #{tpu_custom_call.1} parent=1 // pred_fallthru
      _
    // Predicated region
    $region22: #{tpu_custom_call.1} parent=1 // pred_check
      _
    $region23: #{tpu_custom_call.1} parent=1 // pred_check_branch
      %101 = sbr.rel (0) target = $region25
    $region24: #{tpu_custom_call.1} parent=1 // pred_region
      %103 = dma.done [#allocation4], 256
    $region25: #{tpu_custom_call.1} parent=1 // pred_fallthru
      _
    %104 = vsyncpa [#allocation3], 1
    %105 = vsyncpa [#allocation6], 1
    %106 = vsyncpa [#allocation4], 1

</llo_original>
